<compile_context>
chip_gen: v6e
topology: v6e:2x2x1
jax: 0.10.0
libtpu: 0.0.40
codegen_flags: <defaults>
</compile_context>

<pallas_src>
import functools

import jax
import jax.numpy as jnp
from jax.experimental import pallas as pl
from jax.experimental.pallas import tpu as pltpu

_ALPHA = 0.2                 # LeakyReLU negative slope
_BN_EPS = 1e-5               # BatchNorm2d default eps
_FINAL_LANES = 128           # Cout=1 final conv padded to lane-dense 128 cols


# ---------------------------------------------------------------------------
# Small helpers
# ---------------------------------------------------------------------------

def _round_up(x, m):
    return ((x + m - 1) // m) * m


def _vmem_limit_bytes():
    """Generation-aware scoped-VMEM budget: ~3/4 of physical VMEM, capped at 100 MiB."""
    try:
        cap = int(pltpu.get_tpu_info().vmem_capacity_bytes)
    except Exception:
        cap = 64 * 1024 * 1024
    return min((cap * 3) // 4, 100 * 1024 * 1024)


_VMEM_LIMIT = _vmem_limit_bytes()


def _prep_conv_input(x_nhwc, stride):
    """Pad (pad=1); for stride-2 fold to a stride-1 2x2 conv via space-to-depth.

    Returns (z_bf16, kh_eff, kw_eff, cin_eff, ho, wo)."""
    n, h, w, c = x_nhwc.shape
    xp = jnp.pad(x_nhwc, ((0, 0), (1, 1), (1, 1), (0, 0)))
    hp, wp = h + 2, w + 2
    if stride == 2:
        assert hp % 2 == 0 and wp % 2 == 0, "stride-2 layers need even spatial dims"
        z = xp.reshape(n, hp // 2, 2, wp // 2, 2, c)
        z = z.transpose(0, 1, 3, 2, 4, 5).reshape(n, hp // 2, wp // 2, 4 * c)
        kh = kw = 2
        cin_eff = 4 * c
        ho, wo = hp // 2 - 1, wp // 2 - 1
    else:
        z = xp
        kh = kw = 4
        cin_eff = c
        ho, wo = hp - 3, wp - 3
    return z.astype(jnp.bfloat16), kh, kw, cin_eff, ho, wo


def _prep_conv_weight(w_oihw, stride):
    """OIHW 4x4 weight -> (K, Cout) matching the in-kernel tap / channel order."""
    cout, cin, _, _ = w_oihw.shape
    w = jnp.transpose(w_oihw, (2, 3, 1, 0))            # (4, 4, Cin, Cout)
    if stride == 2:
        # i = 2*i2 + q, j = 2*j2 + p ; z-channel order is (q, p, c).
        w = w.reshape(2, 2, 2, 2, cin, cout)            # (i2, q, j2, p, c, o)
        w = w.transpose(0, 2, 1, 3, 4, 5)                # (i2, j2, q, p, c, o)
    w = w.reshape(16 * cin, cout)
    return w.astype(jnp.bfloat16)


# ---------------------------------------------------------------------------
# Pallas kernels
# ---------------------------------------------------------------------------

def _build_patches(z_ref, kh, kw, ho, wo):
    """In-kernel im2col: (ho*wo, kh*kw*Cin_eff) patch matrix from the VMEM image.

    Only contiguous slices are used (stride already folded away in the wrapper)."""
    zimg = z_ref[...]                                    # (Hp', Wp', Cin_eff)
    cols = []
    for i in range(kh):
        for j in range(kw):
            cols.append(zimg[i:i + ho, j:j + wo, :])
    patches = jnp.concatenate(cols, axis=-1)             # (ho, wo, K)
    return patches.reshape(ho * wo, patches.shape[-1])


def _conv_bias_act_kernel(z_ref, w_ref, b_ref, out_ref, *, kh, kw, ho, wo,
                          alpha, use_lrelu):
    """conv (+bias) (+LeakyReLU): bf16 matmul -> f32 accumulator -> bf16 store."""
    p = _build_patches(z_ref, kh, kw, ho, wo)
    acc = jnp.dot(p, w_ref[...], preferred_element_type=jnp.float32)
    acc = acc + b_ref[...]
    if use_lrelu:
        acc = jnp.where(acc >= 0.0, acc, alpha * acc)
    out_ref[...] = acc.astype(out_ref.dtype)


def _conv_bn_stats_kernel(z_ref, w_ref, pre_ref, stats_ref, *, kh, kw, ho, wo):
    """BN pass 1: conv matmul + per-image per-channel sum / sum-of-squares partials."""
    p = _build_patches(z_ref, kh, kw, ho, wo)
    acc = jnp.dot(p, w_ref[...], preferred_element_type=jnp.float32)
    pre_ref[...] = acc.astype(pre_ref.dtype)
    stats_ref[0:1, :] = jnp.sum(acc, axis=0, keepdims=True)
    stats_ref[1:2, :] = jnp.sum(acc * acc, axis=0, keepdims=True)


def _bn_act_kernel(pre_ref, scale_ref, shift_ref, out_ref, *, alpha):
    """BN pass 2: per-channel affine normalize + LeakyReLU (f32 math, bf16 store)."""
    y = pre_ref[...].astype(jnp.float32) * scale_ref[...] + shift_ref[...]
    y = jnp.where(y >= 0.0, y, alpha * y)
    out_ref[...] = y.astype(out_ref.dtype)


def _final_conv_loss_kernel(z_ref, w_ref, b_ref, sum_ref, hr_ref, hf_ref, *,
                            kh, kw, ho, wo):
    """Final Cout=1 conv fused with per-image loss partials.

    Only lane 0 of the padded weight is real; reductions run on logits[:, :1]."""
    p = _build_patches(z_ref, kh, kw, ho, wo)
    acc = jnp.dot(p, w_ref[...], preferred_element_type=jnp.float32)  # (M, 128)
    logits = acc[:, 0:1] + b_ref[0:1, 0:1]                            # (M, 1)
    sum_ref[0, 0] = jnp.sum(logits)
    hr_ref[0, 0] = jnp.sum(jnp.maximum(1.0 - logits, 0.0))
    hf_ref[0, 0] = jnp.sum(jnp.maximum(1.0 + logits, 0.0))


def _l1_partial_kernel(x_ref, y_ref, o_ref):
    """Per-tile per-lane partial sums of |x - y| (upcast in-kernel)."""
    d = jnp.abs(x_ref[...].astype(jnp.float32) - y_ref[...].astype(jnp.float32))
    o_ref[...] = jnp.sum(d, axis=0, keepdims=True)


# ---------------------------------------------------------------------------
# Conv layer wrappers
# ---------------------------------------------------------------------------

def conv_layer(x_nhwc, layer):
    """One discriminator block: 4x4 conv (+bias) (+BatchNorm batch-stats) (+LeakyReLU)."""
    n = x_nhwc.shape[0]
    cout = layer['w'].shape[0]
    stride = layer['stride']

    z, kh, kw, cin_eff, ho, wo = _prep_conv_input(x_nhwc, stride)
    wmat = _prep_conv_weight(layer['w'], stride)
    k = wmat.shape[0]
    mimg = ho * wo

    z_spec = pl.BlockSpec((None,) + z.shape[1:], lambda i: (i, 0, 0, 0))
    w_spec = pl.BlockSpec(wmat.shape, lambda i: (0, 0))
    row_spec = pl.BlockSpec((1, cout), lambda i: (0, 0))
    out_spec = pl.BlockSpec((None, mimg, cout), lambda i: (i, 0, 0))
    cparams = pltpu.CompilerParams(dimension_semantics=("parallel",),
                                   vmem_limit_bytes=_VMEM_LIMIT)
    cost = pl.CostEstimate(
        flops=int(2 * n * mimg * k * cout), transcendentals=0,
        bytes_accessed=int(z.size * 2 + wmat.size * 2 + n * mimg * cout * 2))

    if not layer['bn']:
        bias = layer['b'].reshape(1, cout).astype(jnp.float32)
        out = pl.pallas_call(
            functools.partial(_conv_bias_act_kernel, kh=kh, kw=kw, ho=ho, wo=wo,
                              alpha=_ALPHA, use_lrelu=layer['lrelu']),
            grid=(n,),
            in_specs=[z_spec, w_spec, row_spec],
            out_specs=out_spec,
            out_shape=jax.ShapeDtypeStruct((n, mimg, cout), jnp.bfloat16),
            compiler_params=cparams,
            cost_estimate=cost,
        )(z, wmat, bias)
    else:
        # Pass 1: conv matmul + per-image partial stats ("parallel" -> both v7x TCs).
        pre, stats = pl.pallas_call(
            functools.partial(_conv_bn_stats_kernel, kh=kh, kw=kw, ho=ho, wo=wo),
            grid=(n,),
            in_specs=[z_spec, w_spec],
            out_specs=(out_spec, pl.BlockSpec((None, 2, cout), lambda i: (i, 0, 0))),
            out_shape=(jax.ShapeDtypeStruct((n, mimg, cout), jnp.bfloat16),
                       jax.ShapeDtypeStruct((n, 2, cout), jnp.float32)),
            compiler_params=cparams,
            cost_estimate=cost,
        )(z, wmat)
        # Reduce the tiny per-image partials in XLA. Per-image row counts are exact,
        # so no padding correction is needed. Biased var matches BatchNorm2d training.
        m_total = float(n * mimg)
        sums = jnp.sum(stats, axis=0)                   # (2, cout)
        mean = sums[0] / m_total
        var = sums[1] / m_total - mean * mean
        rstd = jax.lax.rsqrt(var + _BN_EPS)
        scale = (layer['gamma'] * rstd).reshape(1, cout).astype(jnp.float32)
        shift = (layer['beta'] - layer['gamma'] * rstd * mean).reshape(1, cout).astype(jnp.float32)
        # Pass 2: normalize + LeakyReLU on the bf16 intermediate.
        out = pl.pallas_call(
            functools.partial(_bn_act_kernel, alpha=_ALPHA),
            grid=(n,),
            in_specs=[out_spec, row_spec, row_spec],
            out_specs=out_spec,
            out_shape=jax.ShapeDtypeStruct((n, mimg, cout), jnp.bfloat16),
            compiler_params=cparams,
        )(pre, scale, shift)

    return out.reshape(n, ho, wo, cout)


def _final_conv_loss(x_nhwc, w_oihw, bias):
    """Final Cout=1 conv fused with the loss reductions.

    Returns (sum(logits), sum(relu(1-logits)), sum(relu(1+logits)), num_logits)."""
    n = x_nhwc.shape[0]
    z, kh, kw, cin_eff, ho, wo = _prep_conv_input(x_nhwc, 1)
    wmat = _prep_conv_weight(w_oihw, 1)                       # (K, 1)
    k = wmat.shape[0]
    wmat = jnp.pad(wmat, ((0, 0), (0, _FINAL_LANES - 1)))     # lane-dense MXU operand
    b_row = jnp.pad(bias.reshape(1, 1).astype(jnp.float32),
                    ((0, 0), (0, _FINAL_LANES - 1)))
    mimg = ho * wo

    scalar_spec = pl.BlockSpec((None, 1, 1), lambda i: (i, 0, 0))
    sums = pl.pallas_call(
        functools.partial(_final_conv_loss_kernel, kh=kh, kw=kw, ho=ho, wo=wo),
        grid=(n,),
        in_specs=[pl.BlockSpec((None,) + z.shape[1:], lambda i: (i, 0, 0, 0)),
                  pl.BlockSpec(wmat.shape, lambda i: (0, 0)),
                  pl.BlockSpec((1, _FINAL_LANES), lambda i: (0, 0))],
        out_specs=(scalar_spec, scalar_spec, scalar_spec),
        out_shape=(jax.ShapeDtypeStruct((n, 1, 1), jnp.float32),) * 3,
        compiler_params=pltpu.CompilerParams(dimension_semantics=("parallel",),
                                             vmem_limit_bytes=_VMEM_LIMIT),
        cost_estimate=pl.CostEstimate(
            flops=int(2 * n * mimg * k * _FINAL_LANES), transcendentals=0,
            bytes_accessed=int(z.size * 2 + wmat.size * 2)),
    )(z, wmat, b_row)
    s_logits = jnp.sum(sums[0])
    s_hinge_real = jnp.sum(sums[1])
    s_hinge_fake = jnp.sum(sums[2])
    return s_logits, s_hinge_real, s_hinge_fake, n * mimg


def discriminator_logit_sums(params, x_nchw):
    """Run the PatchGAN discriminator; the final conv is fused with the loss reductions."""
    x = jnp.transpose(x_nchw, (0, 2, 3, 1)).astype(jnp.bfloat16)   # NCHW -> NHWC
    for layer in params[:-1]:
        x = conv_layer(x, layer)
    last = params[-1]
    return _final_conv_loss(x, last['w'], last['b'])


# ---------------------------------------------------------------------------
# L1 reconstruction loss
# ---------------------------------------------------------------------------

def l1_mean(x, y):
    xf = x.reshape(-1)
    yf = y.reshape(-1)
    count = xf.shape[0]
    lanes = 128
    rows = _round_up(pl.cdiv(count, lanes), 8)
    tile_r = min(4096, rows)
    rows_pad = _round_up(rows, tile_r)
    total = rows_pad * lanes
    xf = jnp.pad(xf, (0, total - count)).reshape(rows_pad, lanes)
    yf = jnp.pad(yf, (0, total - count)).reshape(rows_pad, lanes)
    grid_r = rows_pad // tile_r
    partials = pl.pallas_call(
        _l1_partial_kernel,
        grid=(grid_r,),
        in_specs=[pl.BlockSpec((tile_r, lanes), lambda i: (i, 0)),
                  pl.BlockSpec((tile_r, lanes), lambda i: (i, 0))],
        out_specs=pl.BlockSpec((None, 1, lanes), lambda i: (i, 0, 0)),
        out_shape=jax.ShapeDtypeStruct((grid_r, 1, lanes), jnp.float32),
        compiler_params=pltpu.CompilerParams(dimension_semantics=("parallel",),
                                             vmem_limit_bytes=_VMEM_LIMIT),
    )(xf, yf)
    return jnp.sum(partials) / count


# ---------------------------------------------------------------------------
# NLayerDiscriminator parameters
# ---------------------------------------------------------------------------

def init_discriminator_params(key, input_nc=1, ndf=64, n_layers=3):
    kw_ = 4
    specs = [dict(cin=input_nc, cout=ndf, stride=2, bias=True, bn=False, lrelu=True)]
    nf_mult = 1
    for n in range(1, n_layers):
        nf_prev, nf_mult = nf_mult, min(2 ** n, 8)
        specs.append(dict(cin=ndf * nf_prev, cout=ndf * nf_mult, stride=2,
                          bias=False, bn=True, lrelu=True))
    nf_prev, nf_mult = nf_mult, min(2 ** n_layers, 8)
    specs.append(dict(cin=ndf * nf_prev, cout=ndf * nf_mult, stride=1,
                      bias=False, bn=True, lrelu=True))
    specs.append(dict(cin=ndf * nf_mult, cout=1, stride=1,
                      bias=True, bn=False, lrelu=False))

    params = []
    for s in specs:
        key, k1, k2 = jax.random.split(key, 3)
        # weights_init: Conv weights ~ N(0, 0.02); BatchNorm weight ~ N(1, 0.02), bias 0.
        w = 0.02 * jax.random.normal(k1, (s['cout'], s['cin'], kw_, kw_), jnp.float32)
        b = jnp.zeros((s['cout'],), jnp.float32)
        if s['bn']:
            gamma = 1.0 + 0.02 * jax.random.normal(k2, (s['cout'],), jnp.float32)
        else:
            gamma = jnp.ones((s['cout'],), jnp.float32)
        beta = jnp.zeros((s['cout'],), jnp.float32)
        params.append(dict(w=w, b=b, gamma=gamma, beta=beta, **s))
    return params


# ---------------------------------------------------------------------------
# PatchGANLoss forward
# ---------------------------------------------------------------------------

def adopt_weight(weight, global_step, threshold=0, value=0.0):
    # jnp.where instead of a Python `if` so a traced global_step also works under jit.
    return jnp.where(jnp.asarray(global_step) < threshold, value, weight).astype(jnp.float32)


def patchgan_loss_forward(disc_params, inputs, reconstructions, optimizer_idx,
                          global_step, *, disc_start=50000, pixelloss_weight=1.0,
                          disc_factor=1.0, disc_weight=0.2, split='train'):
    del pixelloss_weight  # matches the reference: pixel_weight is never applied
    disc_iter_start = disc_start * 2  # matches self.discriminator_iter_start = disc_start * 2

    rec_loss = nll_loss = l1_mean(inputs, reconstructions)
    df = adopt_weight(disc_factor, global_step, threshold=disc_iter_start)

    if optimizer_idx == 0:
        sum_fake, _, _, m = discriminator_logit_sums(disc_params, reconstructions)
        g_loss = -sum_fake / m
        # TODO(synk): calculate_adaptive_weight needs autograd grads w.r.t. a generator
        # "last_layer" tensor that does not exist here; use the eval-mode fallback d_weight=0.
        d_weight = jnp.asarray(0.0, jnp.float32)
        loss = nll_loss + d_weight * df * g_loss
        log = {
            f'{split}/total_loss': loss,
            f'{split}/rec_loss': rec_loss,
            f'{split}/d_weight': d_weight,
            f'{split}/disc_factor': df,
            f'{split}/g_loss': g_loss,
        }
        return loss, log

    if optimizer_idx == 1:
        sum_real, hinge_real, _, m_r = discriminator_logit_sums(disc_params, inputs)
        sum_fake, _, hinge_fake, m_f = discriminator_logit_sums(disc_params, reconstructions)
        d_loss = df * 0.5 * (hinge_real / m_r + hinge_fake / m_f)
        log = {
            f'{split}/disc_loss': d_loss,
            f'{split}/logits_real': sum_real / m_r,
            f'{split}/logits_fake': sum_fake / m_f,
        }
        return d_loss, log

    raise ValueError("optimizer_idx must be 0 or 1")


# ---------------------------------------------------------------------------
# Demo
# ---------------------------------------------------------------------------

if __name__ == "__main__":
    key = jax.random.PRNGKey(0)
    kp, kx, ky = jax.random.split(key, 3)

    # disc_in_channels=1, ndf=64, n_layers=3  (module defaults)
    disc_params = init_discriminator_params(kp, input_nc=1, ndf=64, n_layers=3)

    # NCHW inputs, 32x32 spatial so the 5-conv PatchGAN stack produces 2x2 logits.
    inputs = jax.random.normal(kx, (2, 1, 32, 32), jnp.float32)
    reconstructions = inputs + 0.1 * jax.random.normal(ky, (2, 1, 32, 32), jnp.float32)

    # Generator branch (optimizer_idx=0)
    loss_g, log_g = patchgan_loss_forward(disc_params, inputs, reconstructions,
                                          optimizer_idx=0, global_step=100001)
    # Discriminator branch (optimizer_idx=1)
    loss_d, log_d = patchgan_loss_forward(disc_params, inputs, reconstructions,
                                          optimizer_idx=1, global_step=100001)

    jax.block_until_ready((loss_g, log_g, loss_d, log_d))
    print("KERNEL_OK")
</pallas_src>

<mosaic_0001>
module attributes {stable_mosaic.version = 11 : i64} {
  func.func @_l1_partial_kernel(%arg0: i32, %arg1: memref<16x128xf32, #tpu.memory_space<vmem>>, %arg2: memref<16x128xf32, #tpu.memory_space<vmem>>, %arg3: memref<1x1x128xf32, #tpu.memory_space<vmem>>) attributes {dimension_semantics = [#tpu.dimension_semantics<parallel>], iteration_bounds = array<i64: 1>, scalar_prefetch = 0 : i64, scratch_operands = 0 : i64, tpu.core_type = #tpu.core_type<tc>, window_params = [{transform_indices = @transform_0, window_bounds = array<i64: 16, 128>}, {transform_indices = @transform_1, window_bounds = array<i64: 16, 128>}, {transform_indices = @transform_2, window_bounds = array<i64: 1, 1, 128>}]} {
    %c0 = arith.constant 0 : index
    %c0_0 = arith.constant 0 : index
    %0 = vector.load %arg1[%c0, %c0_0] : memref<16x128xf32, #tpu.memory_space<vmem>>, vector<16x128xf32>
    %c0_1 = arith.constant 0 : index
    %c0_2 = arith.constant 0 : index
    %1 = vector.load %arg2[%c0_1, %c0_2] : memref<16x128xf32, #tpu.memory_space<vmem>>, vector<16x128xf32>
    %2 = arith.subf %0, %1 : vector<16x128xf32>
    %3 = math.absf %2 : vector<16x128xf32>
    %cst = arith.constant dense<0.000000e+00> : vector<128xf32>
    %4 = vector.multi_reduction <add>, %3, %cst [0] : vector<16x128xf32> to vector<128xf32>
    %5 = vector.shape_cast %4 : vector<128xf32> to vector<1x128xf32>
    %c0_3 = arith.constant 0 : index
    %c0_4 = arith.constant 0 : index
    %c0_5 = arith.constant 0 : index
    %6 = vector.load %arg3[%c0_3, %c0_4, %c0_5] : memref<1x1x128xf32, #tpu.memory_space<vmem>>, vector<1x1x128xf32>
    %7 = vector.shape_cast %6 : vector<1x1x128xf32> to vector<1x128xf32>
    %8 = vector.shape_cast %5 : vector<1x128xf32> to vector<1x1x128xf32>
    tpu.vector_store %arg3[%c0_3, %c0_4, %c0_5], %8 {strides = array<i32>} : memref<1x1x128xf32, #tpu.memory_space<vmem>>, vector<1x1x128xf32>,
    return
  }
  func.func @transform_0(%arg0: i32) -> (i32, i32) {
    %c0_i32 = arith.constant 0 : i32
    %c0_i32_0 = arith.constant 0 : i32
    return %arg0, %c0_i32 : i32, i32
  }
  func.func @transform_1(%arg0: i32) -> (i32, i32) {
    %c0_i32 = arith.constant 0 : i32
    %c0_i32_0 = arith.constant 0 : i32
    return %arg0, %c0_i32 : i32, i32
  }
  func.func @transform_2(%arg0: i32) -> (i32, i32, i32) {
    %c0_i32 = arith.constant 0 : i32
    %c0_i32_0 = arith.constant 0 : i32
    %c0_i32_1 = arith.constant 0 : i32
    return %arg0, %c0_i32, %c0_i32_0 : i32, i32, i32
  }
}

</mosaic_0001>

<llo_original>
// kernel: tpu_custom_call.1
$region0: #{tpu_custom_call.1}
  #allocation0 [shape = 'u32[]', space=smem, size = 0x4, offset = 0x4, fixed_abs, tag = 'smem constant byte address 0x4 - core index']
  #allocation1 [shape = 'u32[144,128]{1,0:T(1,128)}', space=vmem, size = 0x12000, scoped, tag = 'internal scratch']
  %s0 = inlined_call_operand.hbm [shape: f32[16,128], index: 0, kind: input, shape index: {}]
  %s1 = inlined_call_operand.hbm [shape: f32[16,128], index: 1, kind: input, shape index: {}]
  %s2 = inlined_call_operand.hbm [shape: f32[1,1,128], index: 2, kind: output, shape index: {}]
  %s3 = sld [smem:[#allocation0]]
  $region26: #{tpu_custom_call.1} parent=0
    _
  %s5 = ssub.s32 1, %s3
  %s6 = scalar_select 0, %s5, %s3
  $region1: #{tpu_custom_call.1} parent=0
    #allocation2 [shape = 'u8[8192]{0}', space=vmem, size = 0x2000, scoped, tag = 'input window, operand 0, single buffered']
    #allocation3 [shape = 's32[1]{0}', space=sflag, size = 0x4, scoped, tag = 'scoped memory for tpu_custom_call.1']
    #allocation4 [shape = 's32[1]{0}', space=sflag, size = 0x4, scoped, tag = 'scoped memory for tpu_custom_call.1']
    #allocation5 [shape = 'u8[8192]{0}', space=vmem, size = 0x2000, scoped, tag = 'input window, operand 1, single buffered']
    #allocation6 [shape = 's32[1]{0}', space=sflag, size = 0x4, scoped, tag = 'scoped memory for tpu_custom_call.1']
    #allocation7 [shape = 'u8[512]{0}', space=vmem, size = 0x400, scoped, tag = 'output window, operand 0, single buffered']
    %7 = vsyncpa [#allocation3], 0
    %8 = vsyncpa [#allocation6], 0
    %9 = vsyncpa [#allocation4], 0
    // Predicated region
    $region2: #{tpu_custom_call.1} parent=1 // pred_check
      _
    $region3: #{tpu_custom_call.1} parent=1 // pred_check_branch
      %11 = sbr.rel (0) target = $region5
    $region4: #{tpu_custom_call.1} parent=1 // pred_region
      %s13 = ssub.s32 256, 256
      %14 = vsyncadd [#allocation3], %s13
      %s15 = sshll.u32 [#allocation2], 4
      %s16 = int_to_ptr.vmem [resolvable:$true] %s15
      %21 = dma.hbm_to_vmem [thread:$0]  %s0, 256, %s16, [#allocation3], 128, 128, 8
    $region5: #{tpu_custom_call.1} parent=1 // pred_fallthru
      _
    // Predicated region
    $region6: #{tpu_custom_call.1} parent=1 // pred_check
      _
    $region7: #{tpu_custom_call.1} parent=1 // pred_check_branch
      %23 = sbr.rel (0) target = $region9
    $region8: #{tpu_custom_call.1} parent=1 // pred_region
      %s25 = ssub.s32 256, 256
      %26 = vsyncadd [#allocation6], %s25
      %s27 = sshll.u32 [#allocation5], 4
      %s28 = int_to_ptr.vmem [resolvable:$true] %s27
      %33 = dma.hbm_to_vmem [thread:$0]  %s1, 256, %s28, [#allocation6], 128, 128, 8
    $region9: #{tpu_custom_call.1} parent=1 // pred_fallthru
      _
    // Predicated region
    $region10: #{tpu_custom_call.1} parent=1 // pred_check
      _
    $region11: #{tpu_custom_call.1} parent=1 // pred_check_branch
      %35 = sbr.rel (0) target = $region13
    $region12: #{tpu_custom_call.1} parent=1 // pred_region
      %36 = dma.done [#allocation3], 256
    $region13: #{tpu_custom_call.1} parent=1 // pred_fallthru
      _
    // Predicated region
    $region14: #{tpu_custom_call.1} parent=1 // pred_check
      _
    $region15: #{tpu_custom_call.1} parent=1 // pred_check_branch
      %38 = sbr.rel (0) target = $region17
    $region16: #{tpu_custom_call.1} parent=1 // pred_region
      %39 = dma.done [#allocation6], 256
    $region17: #{tpu_custom_call.1} parent=1 // pred_fallthru
      _
    %v40 = vld [vmem:[#allocation2] sm:$0xff]
    %v41 = vld [vmem:[#allocation2 + $0x8] sm:$0xff]
    %v42 = vld [vmem:[#allocation5] sm:$0xff]
    %v43 = vld [vmem:[#allocation5 + $0x8] sm:$0xff]
    %v44 = vsub.f32 %v40, %v42
    %v45 = vsub.f32 %v41, %v43
    %v46 = vand.u32 2147483647, %v44
    %v47 = vand.u32 2147483647, %v45
    %v48 = vadd.f32 %v46, %v47
    %v49 = vrot.slane %v48, 4
    %v50 = vadd.f32 %v48, %v49
    %v51 = vrot.slane %v50, 2
    %v52 = vadd.f32 %v50, %v51
    %v53 = vrot.slane %v52, 1
    %v54 = vadd.f32 %v52, %v53
    %55 = vst [vmem:[#allocation7] sm:$0x1] %v54
    // Predicated region
    $region18: #{tpu_custom_call.1} parent=1 // pred_check
      _
    $region19: #{tpu_custom_call.1} parent=1 // pred_check_branch
      %57 = sbr.rel (0) target = $region21
    $region20: #{tpu_custom_call.1} parent=1 // pred_region
      %s59 = ssub.s32 16, 16
      %60 = vsyncadd [#allocation4], %s59
      %s62 = sshll.u32 [#allocation7], 4
      %s63 = int_to_ptr.vmem [resolvable:$true] %s62
      %65 = dma.vmem_to_hbm [thread:$0]  %s63, 16, %s2, [#allocation4]
    $region21: #{tpu_custom_call.1} parent=1 // pred_fallthru
      _
    // Predicated region
    $region22: #{tpu_custom_call.1} parent=1 // pred_check
      _
    $region23: #{tpu_custom_call.1} parent=1 // pred_check_branch
      %67 = sbr.rel (0) target = $region25
    $region24: #{tpu_custom_call.1} parent=1 // pred_region
      %68 = dma.done [#allocation4], 16
    $region25: #{tpu_custom_call.1} parent=1 // pred_fallthru
      _
    %69 = vsyncpa [#allocation3], 1
    %70 = vsyncpa [#allocation6], 1
    %71 = vsyncpa [#allocation4], 1

</llo_original>
